<compile_context>
chip_gen: v7x
topology: tpu7x:2x2x1
jax: 0.10.0
libtpu: 0.0.40
codegen_flags: <defaults>
</compile_context>

<pallas_src>
import functools

import jax
import jax.numpy as jnp
from jax.experimental import pallas as pl
from jax.experimental.pallas import tpu as pltpu


def _tpu_tile_defaults():
    """(target_block_bytes, vmem_limit_bytes) sized per TPU generation."""
    try:
        kind = jax.devices()[0].device_kind.lower()
    except Exception:
        kind = ""
    if "v5 lite" in kind or "v5e" in kind or "v5litepod" in kind:
        return 4 << 20, 32 << 20          # v5e: raise the 16 MiB scoped default
    if "v6" in kind:
        return 8 << 20, 64 << 20          # v6e: 128 MiB physical VMEM
    return 6 << 20, 48 << 20              # v7x (64 MiB physical) & safe default


def _apply_activation(y, activation, slope):
    if activation == "leaky_relu":
        return jnp.where(y >= 0.0, y, y * slope)
    if activation == "relu":
        return jnp.maximum(y, 0.0)
    if activation == "elu":
        return jnp.where(y >= 0.0, y, jnp.exp(y) - 1.0)
    return y                              # "none"


# ----------------------------------------------------------------------------
# Kernel 1 (two-pass path): per-channel shifted partial sums over H*W (and the
# folded batch rows).  Grid = (batch_blocks, outer_hw, inner_hw); the inner_hw
# axis is the reduction axis; partials flushed once per (b, o) block.
# ----------------------------------------------------------------------------
def _stats_kernel(x_ref, rm_ref, out_ref, acc_ref, *,
                  hw_tile, hw_total, ragged, n_inner):
    i = pl.program_id(2)

    @pl.when(i == 0)
    def _init():
        acc_ref[...] = jnp.zeros_like(acc_ref)

    x = x_ref[...].astype(jnp.float32)                 # (nb, C, hw_tile)
    xc = x - rm_ref[...][None]                         # shifted by running_mean

    def _accum(v):
        # keepdims keeps the lane-reduce result sublane-major: no relayout and
        # no per-tile (1, C) row rewrite -- only a tiny (C, 1) column RMW.
        s1 = jnp.sum(jnp.sum(v, axis=0), axis=1, keepdims=True)        # (C, 1)
        s2 = jnp.sum(jnp.sum(v * v, axis=0), axis=1, keepdims=True)    # (C, 1)
        acc_ref[:, 0:1] += s1
        acc_ref[:, 1:2] += s2

    if ragged:
        tile = pl.program_id(1) * n_inner + i          # global H*W tile index
        is_last = (tile + 1) * hw_tile > hw_total

        @pl.when(is_last)                              # mask only the last tile
        def _masked():
            lane = jax.lax.broadcasted_iota(jnp.int32, xc.shape, dimension=2)
            _accum(jnp.where(tile * hw_tile + lane < hw_total, xc, 0.0))

        @pl.when(jnp.logical_not(is_last))
        def _plain():
            _accum(xc)
    else:
        _accum(xc)

    @pl.when(i == n_inner - 1)
    def _flush():
        out_ref[...] = acc_ref[...].reshape(out_ref.shape)


# ----------------------------------------------------------------------------
# Kernel 2 (two-pass path): y = x * scale_c + shift_c, then activation.
# Lane-dense in/out, output aliased onto the input ("in place").
# ----------------------------------------------------------------------------
def _norm_act_kernel(x_ref, scale_ref, shift_ref, o_ref, *, activation, slope):
    x = x_ref[...].astype(jnp.float32)                 # (nb, C, hw_tile)
    y = x * scale_ref[...][None] + shift_ref[...][None]
    o_ref[...] = _apply_activation(y, activation, slope).astype(o_ref.dtype)


# ----------------------------------------------------------------------------
# Fused single-pass kernel: whole (N, C, H*W) slab resident in VMEM.
# Exact two-pass mean/var (no cancellation), normalize + activation in place,
# and emit (mean, biased var) per channel for the running-stat update.
# ----------------------------------------------------------------------------
def _fused_kernel(x_ref, w_ref, b_ref, y_ref, stats_ref, *,
                  eps, count, activation, slope):
    x = x_ref[...].astype(jnp.float32)                 # (N, C, HW)
    inv_n = 1.0 / count
    mean = jnp.sum(jnp.sum(x, axis=0), axis=1, keepdims=True) * inv_n   # (C,1)
    xc = x - mean[None]
    var = jnp.sum(jnp.sum(xc * xc, axis=0), axis=1, keepdims=True) * inv_n
    inv_std = jax.lax.rsqrt(var + eps)
    scale = w_ref[...] * inv_std                       # (C, 1)
    y = xc * scale[None] + b_ref[...][None]
    y_ref[...] = _apply_activation(y, activation, slope).astype(y_ref.dtype)
    stats_ref[:, 0:1] = mean
    stats_ref[:, 1:2] = var


# ----------------------------------------------------------------------------
# Wrapper
# ----------------------------------------------------------------------------
def abn_forward(x_nchw, weight, bias, running_mean, running_var, *,
                eps=1e-5, momentum=0.1, activation="leaky_relu", slope=0.01,
                training=True, target_block_bytes=None, vmem_limit_bytes=None,
                allow_fused=True):
    """InPlaceABN forward.  Returns (y, new_running_mean, new_running_var).

    The output aliases ``x`` ("in place").  Donate ``x`` at the jit boundary
    (``jax.jit(..., donate_argnums=0)``); otherwise XLA inserts a defensive
    copy that adds a full extra HBM read + write.
    """
    N, C, H, W = x_nchw.shape
    HW = H * W
    count = float(N * HW)
    x3d = x_nchw.reshape(N, C, HW)          # free view: NCHW is already (N,C,H*W)
    itemsize = x_nchw.dtype.itemsize

    default_tile, default_vmem = _tpu_tile_defaults()
    if target_block_bytes is None:
        target_block_bytes = default_tile
    if vmem_limit_bytes is None:
        vmem_limit_bytes = default_vmem

    w_f32 = (weight.astype(jnp.float32) if weight is not None
             else jnp.ones((C,), jnp.float32))
    b_f32 = (bias.astype(jnp.float32) if bias is not None
             else jnp.zeros((C,), jnp.float32))
    rm_f32 = running_mean.astype(jnp.float32)
    rv_f32 = running_var.astype(jnp.float32)

    def _update_running(mean, var):
        # NOTE: count == 1 silently keeps the biased var (PyTorch would NaN).
        unbiased = var * (count / max(count - 1.0, 1.0))
        new_rm = ((1.0 - momentum) * rm_f32 + momentum * mean
                  ).astype(running_mean.dtype)
        new_rv = ((1.0 - momentum) * rv_f32 + momentum * unbiased
                  ).astype(running_var.dtype)
        return new_rm, new_rv

    # ----- fused single-pass path: whole slab resident in VMEM --------------
    slab_bytes = N * C * HW * itemsize
    if training and allow_fused and slab_bytes <= vmem_limit_bytes // 8:
        full_spec = pl.BlockSpec((N, C, HW), lambda i: (0, 0, 0))
        vec_spec = pl.BlockSpec((C, 1), lambda i: (0, 0))
        y3d, stats = pl.pallas_call(
            functools.partial(_fused_kernel, eps=eps, count=count,
                              activation=activation, slope=slope),
            grid=(1,),
            in_specs=[full_spec, vec_spec, vec_spec],
            out_specs=(full_spec, pl.BlockSpec((C, 2), lambda i: (0, 0))),
            out_shape=(jax.ShapeDtypeStruct((N, C, HW), x_nchw.dtype),
                       jax.ShapeDtypeStruct((C, 2), jnp.float32)),
            input_output_aliases={0: 0},        # "InPlace": reuse x's buffer
            compiler_params=pltpu.CompilerParams(
                dimension_semantics=("arbitrary",),
                vmem_limit_bytes=vmem_limit_bytes),
        )(x3d, w_f32.reshape(C, 1), b_f32.reshape(C, 1))
        new_rm, new_rv = _update_running(stats[:, 0], stats[:, 1])
        return y3d.reshape(N, C, H, W), new_rm, new_rv

    # ----- tiled blocking (shared by the stats and the normalize pass) ------
    max_tile = max(128, target_block_bytes // max(C * itemsize, 1))
    if HW <= max_tile:
        hw_tile, ragged = HW, False
        # Small-H*W regime: fold several batch rows into one block.
        nb_cap = max(1, target_block_bytes // max(C * HW * itemsize, 1))
        nb = 1
        for d in range(min(N, nb_cap), 0, -1):
            if N % d == 0:
                nb = d
                break
    else:
        nb = 1
        aligned_max = (max_tile // 128) * 128
        hw_tile, ragged = None, True
        t = aligned_max
        # Prefer a 128-multiple tile that divides H*W -> no ragged tail at all.
        while t >= max(128, aligned_max // 2):
            if HW % t == 0:
                hw_tile, ragged = t, False
                break
            t -= 128
        if hw_tile is None:
            hw_tile, ragged = aligned_max, True

    n_batch = N // nb
    n_hw = pl.cdiv(HW, hw_tile)
    # Give v7x's second TensorCore work when the batch axis alone is 1 / odd.
    n_outer = 2 if (n_batch % 2 == 1 and n_hw % 2 == 0 and n_hw >= 2) else 1
    n_inner = n_hw // n_outer

    x_spec2 = pl.BlockSpec((nb, C, hw_tile), lambda b, i: (b, 0, i))
    vec_spec2 = pl.BlockSpec((C, 1), lambda b, i: (0, 0))

    # ----- pass 1: per-channel shifted batch statistics ----------------------
    if training:
        x_spec3 = pl.BlockSpec((nb, C, hw_tile),
                               lambda b, o, i: (b, 0, o * n_inner + i))
        # TODO(synk): sweep pipeline_mode=pl.Buffered(3) on x_spec3 for this
        # DMA-bound pass (expected <= few % on top of the larger tiles).
        partials = pl.pallas_call(
            functools.partial(_stats_kernel, hw_tile=hw_tile, hw_total=HW,
                              ragged=ragged, n_inner=n_inner),
            grid=(n_batch, n_outer, n_inner),
            in_specs=[x_spec3,
                      pl.BlockSpec((C, 1), lambda b, o, i: (0, 0))],
            out_specs=pl.BlockSpec((1, 1, C, 2), lambda b, o, i: (b, o, 0, 0)),
            out_shape=jax.ShapeDtypeStruct((n_batch, n_outer, C, 2),
                                           jnp.float32),
            scratch_shapes=[pltpu.VMEM((C, 2), jnp.float32)],
            compiler_params=pltpu.CompilerParams(
                dimension_semantics=("parallel", "parallel", "arbitrary"),
                vmem_limit_bytes=vmem_limit_bytes),
        )(x3d, rm_f32.reshape(C, 1))
        sums = jnp.sum(partials, axis=(0, 1))          # (C, 2) tiny XLA reduce
        m1 = sums[:, 0] / count                        # E[x - running_mean]
        mean = rm_f32 + m1
        # Shifted sums keep cancellation small even for large |mean| / std.
        var = jnp.maximum(sums[:, 1] / count - m1 * m1, 0.0)
        new_rm, new_rv = _update_running(mean, var)
    else:
        mean, var = rm_f32, rv_f32
        new_rm, new_rv = running_mean, running_var

    # ----- fold BN into per-channel scale / shift (tiny C-length math) ------
    inv_std = jax.lax.rsqrt(var + eps)
    scale = w_f32 * inv_std
    shift = b_f32 - mean * scale

    # ----- pass 2: normalize + activation, in place --------------------------
    y3d = pl.pallas_call(
        functools.partial(_norm_act_kernel, activation=activation, slope=slope),
        grid=(n_batch, n_hw),
        in_specs=[x_spec2, vec_spec2, vec_spec2],
        out_specs=x_spec2,
        out_shape=jax.ShapeDtypeStruct((N, C, HW), x_nchw.dtype),
        input_output_aliases={0: 0},            # "InPlace": reuse x's buffer
        compiler_params=pltpu.CompilerParams(
            dimension_semantics=("parallel", "parallel"),
            vmem_limit_bytes=vmem_limit_bytes),
    )(x3d, scale.reshape(C, 1), shift.reshape(C, 1))

    return y3d.reshape(N, C, H, W), new_rm, new_rv


# ----------------------------------------------------------------------------
# Pure-JAX reference for validation (functional.batch_norm training + act).
# ----------------------------------------------------------------------------
def abn_reference(x, weight, bias, running_mean, running_var, *,
                  eps=1e-5, momentum=0.1, activation="leaky_relu", slope=0.01):
    xf = x.astype(jnp.float32)
    mean = jnp.mean(xf, axis=(0, 2, 3))
    var = jnp.mean((xf - mean.reshape(1, -1, 1, 1)) ** 2, axis=(0, 2, 3))
    y = (xf - mean.reshape(1, -1, 1, 1)) * jax.lax.rsqrt(
        var.reshape(1, -1, 1, 1) + eps)
    y = y * weight.reshape(1, -1, 1, 1) + bias.reshape(1, -1, 1, 1)
    y = _apply_activation(y, activation, slope)
    n = x.shape[0] * x.shape[2] * x.shape[3]
    unbiased = var * n / max(n - 1, 1)
    new_rm = (1.0 - momentum) * running_mean + momentum * mean
    new_rv = (1.0 - momentum) * running_var + momentum * unbiased
    return y.astype(x.dtype), new_rm, new_rv


if __name__ == "__main__":
    eps, momentum = 1e-5, 0.1

    def check(key, shape, activation, slope, *, target_block_bytes=None,
              allow_fused=True, tol=1e-4):
        N, C, H, W = shape
        kx, kw, kb, km = jax.random.split(key, 4)
        x = jax.random.normal(kx, shape, dtype=jnp.float32) * 1.5 + 0.3
        weight = jax.random.normal(kw, (C,), jnp.float32) * 0.2 + 1.0
        bias = jax.random.normal(kb, (C,), jnp.float32) * 0.1
        running_mean = jax.random.normal(km, (C,), jnp.float32) * 0.5
        running_var = jnp.ones((C,), jnp.float32)

        # References computed before the call: x is donated ("in place" ABN).
        y_exp, rm_exp, rv_exp = abn_reference(
            x, weight, bias, running_mean, running_var,
            eps=eps, momentum=momentum, activation=activation, slope=slope)

        fwd = jax.jit(
            functools.partial(abn_forward, eps=eps, momentum=momentum,
                              activation=activation, slope=slope, training=True,
                              target_block_bytes=target_block_bytes,
                              allow_fused=allow_fused),
            donate_argnums=0)                      # avoid the defensive copy
        y, new_rm, new_rv = fwd(x, weight, bias, running_mean, running_var)
        y = jax.block_until_ready(y)

        assert y.shape == shape and y.dtype == jnp.float32
        assert float(jnp.max(jnp.abs(y - y_exp))) < tol
        assert float(jnp.max(jnp.abs(new_rm - rm_exp))) < tol
        assert float(jnp.max(jnp.abs(new_rv - rv_exp))) < tol

    key = jax.random.PRNGKey(0)
    k1, k2, k3, k4 = jax.random.split(key, 4)

    # 1) Fused single-pass path (small slab lives entirely in VMEM).
    check(k1, (2, 4, 16, 16), "leaky_relu", 0.01)
    # 2) Two-pass path: H*W tiling with a ragged last tile.
    check(k2, (2, 4, 10, 20), "leaky_relu", 0.01,
          target_block_bytes=2048, allow_fused=False)
    # 3) Two-pass path: small-H*W regime with batch-row folding (elu branch).
    check(k3, (4, 8, 4, 8), "elu", 0.01,
          target_block_bytes=2048, allow_fused=False)
    # 4) Two-pass path: N=1, H*W tiles split over an extra parallel axis.
    check(k4, (1, 4, 16, 32), "leaky_relu", 0.01,
          target_block_bytes=4096, allow_fused=False)

    print("KERNEL_OK")
</pallas_src>

<mosaic_0001>
module attributes {stable_mosaic.version = 11 : i64} {
  func.func @_fused_kernel(%arg0: i32, %arg1: memref<2x4x256xf32, #tpu.memory_space<vmem>>, %arg2: memref<4x1xf32, #tpu.memory_space<vmem>>, %arg3: memref<4x1xf32, #tpu.memory_space<vmem>>, %arg4: memref<2x4x256xf32, #tpu.memory_space<vmem>>, %arg5: memref<4x2xf32, #tpu.memory_space<vmem>>) attributes {dimension_semantics = [#tpu.dimension_semantics<arbitrary>], iteration_bounds = array<i64: 1>, scalar_prefetch = 0 : i64, scratch_operands = 0 : i64, tpu.core_type = #tpu.core_type<tc>, window_params = [{pipeline_mode = #tpu.pipeline_mode<synchronous>, transform_indices = @transform_0, window_bounds = array<i64: 2, 4, 256>}, {pipeline_mode = #tpu.pipeline_mode<synchronous>, transform_indices = @transform_1, window_bounds = array<i64: 4, 1>}, {pipeline_mode = #tpu.pipeline_mode<synchronous>, transform_indices = @transform_2, window_bounds = array<i64: 4, 1>}, {pipeline_mode = #tpu.pipeline_mode<synchronous>, transform_indices = @transform_3, window_bounds = array<i64: 2, 4, 256>}, {pipeline_mode = #tpu.pipeline_mode<synchronous>, transform_indices = @transform_4, window_bounds = array<i64: 4, 2>}]} {
    %c0 = arith.constant 0 : index
    %c0_0 = arith.constant 0 : index
    %c0_1 = arith.constant 0 : index
    %0 = vector.load %arg1[%c0, %c0_0, %c0_1] : memref<2x4x256xf32, #tpu.memory_space<vmem>>, vector<2x4x256xf32>
    %cst = arith.constant dense<0.000000e+00> : vector<4x256xf32>
    %1 = vector.multi_reduction <add>, %0, %cst [0] : vector<2x4x256xf32> to vector<4x256xf32>
    %cst_2 = arith.constant dense<0.000000e+00> : vector<4xf32>
    %2 = vector.multi_reduction <add>, %1, %cst_2 [1] : vector<4x256xf32> to vector<4xf32>
    %3 = vector.shape_cast %2 : vector<4xf32> to vector<4x1xf32>
    %cst_3 = arith.constant 0.001953125 : f32
    %4 = vector.broadcast %cst_3 : f32 to vector<4x1xf32>
    %5 = arith.mulf %3, %4 : vector<4x1xf32>
    %6 = vector.shape_cast %5 : vector<4x1xf32> to vector<1x4x1xf32>
    %7 = vector.broadcast %6 : vector<1x4x1xf32> to vector<2x4x256xf32>
    %8 = arith.subf %0, %7 : vector<2x4x256xf32>
    %9 = arith.mulf %8, %8 : vector<2x4x256xf32>
    %cst_4 = arith.constant dense<0.000000e+00> : vector<4x256xf32>
    %10 = vector.multi_reduction <add>, %9, %cst_4 [0] : vector<2x4x256xf32> to vector<4x256xf32>
    %cst_5 = arith.constant dense<0.000000e+00> : vector<4xf32>
    %11 = vector.multi_reduction <add>, %10, %cst_5 [1] : vector<4x256xf32> to vector<4xf32>
    %12 = vector.shape_cast %11 : vector<4xf32> to vector<4x1xf32>
    %cst_6 = arith.constant 0.001953125 : f32
    %13 = vector.broadcast %cst_6 : f32 to vector<4x1xf32>
    %14 = arith.mulf %12, %13 : vector<4x1xf32>
    %cst_7 = arith.constant 9.99999974E-6 : f32
    %15 = vector.broadcast %cst_7 : f32 to vector<4x1xf32>
    %16 = arith.addf %14, %15 : vector<4x1xf32>
    %17 = math.rsqrt %16 : vector<4x1xf32>
    %c0_8 = arith.constant 0 : index
    %c0_9 = arith.constant 0 : index
    %18 = vector.load %arg2[%c0_8, %c0_9] : memref<4x1xf32, #tpu.memory_space<vmem>>, vector<4x1xf32>
    %19 = arith.mulf %18, %17 : vector<4x1xf32>
    %20 = vector.shape_cast %19 : vector<4x1xf32> to vector<1x4x1xf32>
    %21 = vector.broadcast %20 : vector<1x4x1xf32> to vector<2x4x256xf32>
    %22 = arith.mulf %8, %21 : vector<2x4x256xf32>
    %c0_10 = arith.constant 0 : index
    %c0_11 = arith.constant 0 : index
    %23 = vector.load %arg3[%c0_10, %c0_11] : memref<4x1xf32, #tpu.memory_space<vmem>>, vector<4x1xf32>
    %24 = vector.shape_cast %23 : vector<4x1xf32> to vector<1x4x1xf32>
    %25 = vector.broadcast %24 : vector<1x4x1xf32> to vector<2x4x256xf32>
    %26 = arith.addf %22, %25 : vector<2x4x256xf32>
    %cst_12 = arith.constant 0.000000e+00 : f32
    %27 = vector.broadcast %cst_12 : f32 to vector<2x4x256xf32>
    %28 = arith.cmpf oge, %26, %27 : vector<2x4x256xf32>
    %cst_13 = arith.constant 0.00999999977 : f32
    %29 = vector.broadcast %cst_13 : f32 to vector<2x4x256xf32>
    %30 = arith.mulf %26, %29 : vector<2x4x256xf32>
    %31 = arith.select %28, %26, %30 : vector<2x4x256xi1>, vector<2x4x256xf32>
    %c0_14 = arith.constant 0 : index
    %c0_15 = arith.constant 0 : index
    %c0_16 = arith.constant 0 : index
    %32 = vector.load %arg4[%c0_14, %c0_15, %c0_16] : memref<2x4x256xf32, #tpu.memory_space<vmem>>, vector<2x4x256xf32>
    tpu.vector_store %arg4[%c0_14, %c0_15, %c0_16], %31 {strides = array<i32>} : memref<2x4x256xf32, #tpu.memory_space<vmem>>, vector<2x4x256xf32>,
    %c0_17 = arith.constant 0 : index
    %c0_18 = arith.constant 0 : index
    %33 = vector.load %arg5[%c0_17, %c0_18] : memref<4x2xf32, #tpu.memory_space<vmem>>, vector<4x1xf32>
    tpu.vector_store %arg5[%c0_17, %c0_18], %5 {strides = array<i32>} : memref<4x2xf32, #tpu.memory_space<vmem>>, vector<4x1xf32>,
    %c0_19 = arith.constant 0 : index
    %c1 = arith.constant 1 : index
    %34 = vector.load %arg5[%c0_19, %c1] : memref<4x2xf32, #tpu.memory_space<vmem>>, vector<4x1xf32>
    tpu.vector_store %arg5[%c0_19, %c1], %14 {strides = array<i32>} : memref<4x2xf32, #tpu.memory_space<vmem>>, vector<4x1xf32>,
    return
  }
  func.func @transform_0(%arg0: i32) -> (i32, i32, i32) {
    %c0_i32 = arith.constant 0 : i32
    %c0_i32_0 = arith.constant 0 : i32
    %c0_i32_1 = arith.constant 0 : i32
    %c0_i32_2 = arith.constant 0 : i32
    return %c0_i32, %c0_i32_0, %c0_i32_1 : i32, i32, i32
  }
  func.func @transform_1(%arg0: i32) -> (i32, i32) {
    %c0_i32 = arith.constant 0 : i32
    %c0_i32_0 = arith.constant 0 : i32
    %c0_i32_1 = arith.constant 0 : i32
    return %c0_i32, %c0_i32_0 : i32, i32
  }
  func.func @transform_2(%arg0: i32) -> (i32, i32) {
    %c0_i32 = arith.constant 0 : i32
    %c0_i32_0 = arith.constant 0 : i32
    %c0_i32_1 = arith.constant 0 : i32
    return %c0_i32, %c0_i32_0 : i32, i32
  }
  func.func @transform_3(%arg0: i32) -> (i32, i32, i32) {
    %c0_i32 = arith.constant 0 : i32
    %c0_i32_0 = arith.constant 0 : i32
    %c0_i32_1 = arith.constant 0 : i32
    %c0_i32_2 = arith.constant 0 : i32
    return %c0_i32, %c0_i32_0, %c0_i32_1 : i32, i32, i32
  }
  func.func @transform_4(%arg0: i32) -> (i32, i32) {
    %c0_i32 = arith.constant 0 : i32
    %c0_i32_0 = arith.constant 0 : i32
    %c0_i32_1 = arith.constant 0 : i32
    return %c0_i32, %c0_i32_0 : i32, i32
  }
}

</mosaic_0001>

<llo_original>
// kernel: abn_forward.1
$region0: #{abn_forward.1}
  #allocation0 [shape = 'u32[]', space=smem, size = 0x4, offset = 0x4, fixed_abs, tag = 'smem constant byte address 0x4 - core index']
  #allocation1 [shape = 'u32[144,128]{1,0:T(1,128)}', space=vmem, size = 0x12000, scoped, tag = 'internal scratch']
  %s0 = inlined_call_operand.vmem [shape: f32[2,4,256], index: 0, kind: input, shape index: {}, may-alias: {0,3}]
  %s1 = inlined_call_operand.vmem [shape: f32[4,1], index: 1, kind: input, shape index: {}]
  %s2 = inlined_call_operand.vmem [shape: f32[4,1], index: 2, kind: input, shape index: {}]
  %s3 = inlined_call_operand.vmem [shape: f32[2,4,256], index: 3, kind: output, shape index: {0}, may-alias: {0,3}]
  %s4 = inlined_call_operand.vmem [shape: f32[4,2], index: 4, kind: output, shape index: {1}]
  %5 = xla_tuple %s3, %s4
  %s6 = sld [smem:[#allocation0]]
  $region30: #{abn_forward.1} parent=0
    _
  %s8 = ssub.s32 1, %s6
  %s9 = scalar_select 0, %s8, %s6
  // Predicated region
  $region2: #{abn_forward.1} parent=0 // pred_check
    _
  $region3: #{abn_forward.1} parent=0 // pred_check_branch
    %11 = sbr.rel (0) target = $region5
  $region4: #{abn_forward.1} parent=0 // pred_region
    _
  $region5: #{abn_forward.1} parent=0 // pred_fallthru
    _
  // Predicated region
  $region6: #{abn_forward.1} parent=0 // pred_check
    _
  $region7: #{abn_forward.1} parent=0 // pred_check_branch
    %13 = sbr.rel (0) target = $region9
  $region8: #{abn_forward.1} parent=0 // pred_region
    _
  $region9: #{abn_forward.1} parent=0 // pred_fallthru
    _
  // Predicated region
  $region10: #{abn_forward.1} parent=0 // pred_check
    _
  $region11: #{abn_forward.1} parent=0 // pred_check_branch
    %15 = sbr.rel (0) target = $region13
  $region12: #{abn_forward.1} parent=0 // pred_region
    _
  $region13: #{abn_forward.1} parent=0 // pred_fallthru
    _
  %v16 = vld [vmem:[%s0] sm:$0xff]
  %v17 = vld [vmem:[%s0 + $0x8] sm:$0xff]
  %v20 = vcombine.high %v16, %v16
  %v21 = vcombine.high %v17, %v17
  %vm24 = vcmask 1043456
  %v25 = vsel %vm24, %v16, 0.0
  %v26 = vsel %vm24, %v17, 0.0
  %v27 = vadd.f32 %v25, %v26
  %v28 = vsel %vm24, %v20, 0.0
  %v29 = vsel %vm24, %v21, 0.0
  %v30 = vadd.f32 %v28, %v29
  %v31 = vsel %vm24, %v27, 0.0
  %v32 = vsel %vm24, %v30, 0.0
  %v33 = vadd.f32 %v31, %v32
  %34 = vadd.xlane.f32.xlu0 %v33
  %v35 = vpop.xlane.xlu0 %34
  %v36 = vmul.f32 %v35, 0.001953125
  %v39 = vunpack.c.l.s4 839922192
  %v40 = vunpack.c.0.s8 %v39
  %v41 = vlaneseq
  %v42 = vshrl.u32 %v41, 7
  %v43 = vsub.s32 %v40, %v42
  %v44 = vrot.slane %v36, %v43
  %v46 = vsub.f32 %v16, %v44
  %v47 = vsub.f32 %v17, %v44
  %v48 = vmul.f32 %v46, %v46
  %v49 = vmul.f32 %v47, %v47
  %v52 = vcombine.high %v48, %v48
  %v53 = vcombine.high %v49, %v49
  %v56 = vsel %vm24, %v48, 0.0
  %v57 = vsel %vm24, %v49, 0.0
  %v58 = vadd.f32 %v56, %v57
  %v59 = vsel %vm24, %v52, 0.0
  %v60 = vsel %vm24, %v53, 0.0
  %v61 = vadd.f32 %v59, %v60
  %v62 = vsel %vm24, %v58, 0.0
  %v63 = vsel %vm24, %v61, 0.0
  %v64 = vadd.f32 %v62, %v63
  %65 = vadd.xlane.f32.xlu0 %v64
  %v66 = vpop.xlane.xlu0 %65
  %v67 = vmul.f32 %v66, 0.001953125
  %v68 = vadd.f32 %v67, 1e-05
  %v69 = vrsqrt.pop %v68
  %v70 = vld [vmem:[%s1] sm:$0xf]
  %v71 = vmul.f32 %v70, %v69
  %73 = vset.pattern.permute.xlu0 0
  %74 = vperm.xlu0 %73, %v71
  %v75 = vpop.permute.xlu0 %74
  %v77 = vunpack.c.l.s4 839922192
  %v78 = vunpack.c.0.s8 %v77
  %v79 = vlaneseq
  %v80 = vshrl.u32 %v79, 7
  %v81 = vsub.s32 %v78, %v80
  %v82 = vrot.slane %v75, %v81
  %v84 = vmul.f32 %v46, %v82
  %v85 = vmul.f32 %v47, %v82
  %v86 = vld [vmem:[%s2] sm:$0xf]
  %88 = vset.pattern.permute.xlu0 0
  %89 = vperm.xlu0 %88, %v86
  %v90 = vpop.permute.xlu0 %89
  %v92 = vunpack.c.l.s4 839922192
  %v93 = vunpack.c.0.s8 %v92
  %v94 = vlaneseq
  %v95 = vshrl.u32 %v94, 7
  %v96 = vsub.s32 %v93, %v95
  %v97 = vrot.slane %v90, %v96
  %v99 = vadd.f32 %v84, %v97
  %v100 = vadd.f32 %v85, %v97
  %vm101 = vcmp.ge.f32.partialorder %v99, 0.0
  %vm102 = vcmp.ge.f32.partialorder %v100, 0.0
  %v103 = vmul.f32 %v99, 0.01
  %v104 = vmul.f32 %v100, 0.01
  %v105 = vsel %vm101, %v99, %v103
  %v106 = vsel %vm102, %v100, %v104
  %107 = vst [vmem:[%s3] sm:$0xff] %v105
  %108 = vst [vmem:[%s3 + $0x8] sm:$0xff] %v106
  %vm109 = vcmask 3072
  %110 = vst.msk [vmem:[%s4] sm:$0xf] %vm109, %v36
  %vm111 = vcmask 11272
  %112 = vst.msk [vmem:[%s4] sm:$0xf] %vm111, %v67
  // Predicated region
  $region14: #{abn_forward.1} parent=0 // pred_check
    _
  $region15: #{abn_forward.1} parent=0 // pred_check_branch
    %114 = sbr.rel (0) target = $region17
  $region16: #{abn_forward.1} parent=0 // pred_region
    _
  $region17: #{abn_forward.1} parent=0 // pred_fallthru
    _
  // Predicated region
  $region18: #{abn_forward.1} parent=0 // pred_check
    _
  $region19: #{abn_forward.1} parent=0 // pred_check_branch
    %116 = sbr.rel (0) target = $region21
  $region20: #{abn_forward.1} parent=0 // pred_region
    _
  $region21: #{abn_forward.1} parent=0 // pred_fallthru
    _
  // Predicated region
  $region22: #{abn_forward.1} parent=0 // pred_check
    _
  $region23: #{abn_forward.1} parent=0 // pred_check_branch
    %118 = sbr.rel (0) target = $region25
  $region24: #{abn_forward.1} parent=0 // pred_region
    _
  $region25: #{abn_forward.1} parent=0 // pred_fallthru
    _
  // Predicated region
  $region26: #{abn_forward.1} parent=0 // pred_check
    _
  $region27: #{abn_forward.1} parent=0 // pred_check_branch
    %120 = sbr.rel (0) target = $region29
  $region28: #{abn_forward.1} parent=0 // pred_region
    _
  $region29: #{abn_forward.1} parent=0 // pred_fallthru
    _

</llo_original>
